<compile_context>
chip_gen: v5e
topology: v5e:2x2
jax: 0.10.0
libtpu: 0.0.40
codegen_flags: <defaults>
</compile_context>

<pallas_src>
import functools

import jax
import jax.numpy as jnp
from jax.experimental import pallas as pl
from jax.experimental.pallas import tpu as pltpu


def _round_up(x, m):
    return (x + m - 1) // m * m


def _sce_kernel(logits_ref, labels_ref, out_ref, *, alpha, total_n):
    x = logits_ref[...].astype(jnp.float32)          # (TN, C)
    labels = labels_ref[...]                          # (TN, 1) int32
    tn, num_classes = x.shape

    # Numerically stable logsumexp of the shifted logits.
    m = jnp.max(x, axis=-1, keepdims=True)            # (TN, 1)
    shifted = x - m                                    # (TN, C)
    lse = jnp.log(jnp.sum(jnp.exp(shifted), axis=-1, keepdims=True))  # (TN, 1)

    # Smoothed target distribution without materialising a f32 one_hot.
    off = jnp.float32(alpha / num_classes)
    on = jnp.float32(1.0 - alpha + alpha / num_classes)
    class_ids = jax.lax.broadcasted_iota(jnp.int32, x.shape, 1)
    target = jnp.where(class_ids == labels, on, off)   # (TN, C)

    # target sums to 1 per row => loss = lse - <target, shifted>
    per_row = lse - jnp.sum(target * shifted, axis=-1, keepdims=True)  # (TN, 1)

    # Mask out padded rows (keep divisor = true N in the wrapper).
    row0 = pl.program_id(0) * tn
    row_ids = row0 + jax.lax.broadcasted_iota(jnp.int32, per_row.shape, 0)
    per_row = jnp.where(row_ids < total_n, per_row, jnp.float32(0.0))

    # One distinct partial-sum block per grid step -> no revisit, no race.
    out_ref[0, 0] = jnp.sum(per_row)


def smooth_cross_entropy(logits, labels, alpha=0.0, *, block_rows=None,
                         target_block_bytes=2 << 20):
    """logits: [N, C] (f32 or bf16), labels: [N] int -> scalar f32 mean loss."""
    n, c = logits.shape
    itemsize = jnp.dtype(logits.dtype).itemsize
    row_mult = {4: 8, 2: 16, 1: 32}.get(itemsize, 8)   # sublane packing per dtype

    if block_rows is not None:
        block_n = _round_up(int(block_rows), row_mult)
    elif n * c * itemsize <= target_block_bytes:
        # Tiny problem: one grid step, zero per-step overhead to amortise.
        block_n = _round_up(n, row_mult)
    else:
        # ~2 MiB of logits per block, rounded down to the sublane multiple.
        block_n = max(row_mult,
                      (target_block_bytes // (c * itemsize)) // row_mult * row_mult)

    n_pad = _round_up(n, block_n)
    num_tiles = n_pad // block_n

    if n_pad != n:
        logits = jnp.pad(logits, ((0, n_pad - n), (0, 0)))
        labels = jnp.pad(labels, ((0, n_pad - n),))
    labels2d = labels.astype(jnp.int32).reshape(n_pad, 1)

    kernel = functools.partial(_sce_kernel, alpha=float(alpha), total_n=n)

    partials = pl.pallas_call(
        kernel,
        out_shape=jax.ShapeDtypeStruct((num_tiles, 1), jnp.float32),
        grid_spec=pltpu.PrefetchScalarGridSpec(
            num_scalar_prefetch=0,
            grid=(num_tiles,),
            in_specs=[
                pl.BlockSpec((block_n, c), lambda i: (i, 0)),
                pl.BlockSpec((block_n, 1), lambda i: (i, 0)),
            ],
            out_specs=pl.BlockSpec(
                (1, 1), lambda i: (i, 0), memory_space=pltpu.SMEM
            ),
        ),
        compiler_params=pltpu.CompilerParams(
            dimension_semantics=("parallel",),
            vmem_limit_bytes=32 << 20,   # safe on v5e/v6e (128 MiB) and v7x (64 MiB)
        ),
    )(logits, labels2d)

    return jnp.sum(partials) / jnp.float32(n)


def _reference(logits, labels, alpha):
    num_classes = logits.shape[-1]
    one_hot = jax.nn.one_hot(labels, num_classes, dtype=jnp.float32)
    target = one_hot * (1.0 - alpha) + alpha / num_classes
    logp = jax.nn.log_softmax(logits.astype(jnp.float32), axis=-1)
    return -(target * logp).sum(-1).mean()


if __name__ == "__main__":
    key = jax.random.PRNGKey(0)
    k1, k2, k3, k4 = jax.random.split(key, 4)

    alpha = 0.1
    N, C = 16, 32

    # Case 1: small f32 problem -> single grid step.
    logits = jax.random.normal(k1, (N, C), dtype=jnp.float32)
    labels = jax.random.randint(k2, (N,), 0, C, dtype=jnp.int32)
    loss = jax.block_until_ready(smooth_cross_entropy(logits, labels, alpha=alpha))
    ref = _reference(logits, labels, alpha)
    assert jnp.allclose(loss, ref, atol=1e-5, rtol=1e-5), (loss, ref)

    # Case 2: N not a multiple of the tile -> padding + mask path.
    N2 = 10
    logits2 = jax.random.normal(k3, (N2, C), dtype=jnp.float32)
    labels2 = jax.random.randint(k4, (N2,), 0, C, dtype=jnp.int32)
    loss2 = jax.block_until_ready(smooth_cross_entropy(logits2, labels2, alpha=alpha))
    ref2 = _reference(logits2, labels2, alpha)
    assert jnp.allclose(loss2, ref2, atol=1e-5, rtol=1e-5), (loss2, ref2)

    # Case 3: multi-tile parallel grid with native-bf16 inputs.
    N3 = 48
    logits3 = jax.random.normal(k1, (N3, C), dtype=jnp.float32).astype(jnp.bfloat16)
    labels3 = jax.random.randint(k2, (N3,), 0, C, dtype=jnp.int32)
    loss3 = jax.block_until_ready(
        smooth_cross_entropy(logits3, labels3, alpha=alpha, block_rows=16))
    ref3 = _reference(logits3.astype(jnp.float32), labels3, alpha)
    assert jnp.allclose(loss3, ref3, atol=1e-4, rtol=1e-4), (loss3, ref3)

    print("KERNEL_OK")
</pallas_src>

<mosaic_0001>
module attributes {stable_mosaic.version = 11 : i64} {
  func.func @_sce_kernel(%arg0: i32, %arg1: memref<16x32xf32, #tpu.memory_space<vmem>>, %arg2: memref<16x1xi32, #tpu.memory_space<vmem>>, %arg3: memref<1x1xf32, #tpu.memory_space<smem>>) attributes {dimension_semantics = [#tpu.dimension_semantics<parallel>], iteration_bounds = array<i64: 1>, scalar_prefetch = 0 : i64, scratch_operands = 0 : i64, tpu.core_type = #tpu.core_type<tc>, window_params = [{transform_indices = @transform_0, window_bounds = array<i64: 16, 32>}, {transform_indices = @transform_1, window_bounds = array<i64: 16, 1>}, {transform_indices = @transform_2, window_bounds = array<i64: 1, 1>}]} {
    %c0 = arith.constant 0 : index
    %c0_0 = arith.constant 0 : index
    %0 = vector.load %arg1[%c0, %c0_0] : memref<16x32xf32, #tpu.memory_space<vmem>>, vector<16x32xf32>
    %c0_1 = arith.constant 0 : index
    %c0_2 = arith.constant 0 : index
    %1 = vector.load %arg2[%c0_1, %c0_2] : memref<16x1xi32, #tpu.memory_space<vmem>>, vector<16x1xi32>
    %cst = arith.constant dense<0xFF800000> : vector<16xf32>
    %2 = vector.multi_reduction <maximumf>, %0, %cst [1] : vector<16x32xf32> to vector<16xf32>
    %3 = vector.shape_cast %2 : vector<16xf32> to vector<16x1xf32>
    %4 = vector.broadcast %3 : vector<16x1xf32> to vector<16x32xf32>
    %5 = arith.subf %0, %4 : vector<16x32xf32>
    %6 = math.exp %5 : vector<16x32xf32>
    %cst_3 = arith.constant dense<0.000000e+00> : vector<16xf32>
    %7 = vector.multi_reduction <add>, %6, %cst_3 [1] : vector<16x32xf32> to vector<16xf32>
    %8 = vector.shape_cast %7 : vector<16xf32> to vector<16x1xf32>
    %9 = math.log %8 : vector<16x1xf32>
    %10 = tpu.iota {dimensions = array<i32: 1>} : vector<16x32xi32>
    %11 = vector.broadcast %1 : vector<16x1xi32> to vector<16x32xi32>
    %12 = arith.cmpi eq, %10, %11 : vector<16x32xi32>
    %cst_4 = arith.constant 0.903124988 : f32
    %cst_5 = arith.constant 3.125000e-03 : f32
    %13 = vector.broadcast %cst_4 : f32 to vector<16x32xf32>
    %14 = vector.broadcast %cst_5 : f32 to vector<16x32xf32>
    %15 = arith.select %12, %13, %14 : vector<16x32xi1>, vector<16x32xf32>
    %16 = arith.mulf %15, %5 : vector<16x32xf32>
    %cst_6 = arith.constant dense<0.000000e+00> : vector<16xf32>
    %17 = vector.multi_reduction <add>, %16, %cst_6 [1] : vector<16x32xf32> to vector<16xf32>
    %18 = vector.shape_cast %17 : vector<16xf32> to vector<16x1xf32>
    %19 = arith.subf %9, %18 : vector<16x1xf32>
    %c16_i32 = arith.constant 16 : i32
    %20 = arith.muli %arg0, %c16_i32 : i32
    %21 = tpu.iota {dimensions = array<i32: 0>} : vector<16x1xi32>
    %22 = vector.broadcast %20 : i32 to vector<16x1xi32>
    %23 = arith.addi %22, %21 : vector<16x1xi32>
    %c16_i32_7 = arith.constant 16 : i32
    %24 = vector.broadcast %c16_i32_7 : i32 to vector<16x1xi32>
    %25 = arith.cmpi slt, %23, %24 : vector<16x1xi32>
    %cst_8 = arith.constant 0.000000e+00 : f32
    %26 = vector.broadcast %cst_8 : f32 to vector<16x1xf32>
    %27 = arith.select %25, %19, %26 : vector<16x1xi1>, vector<16x1xf32>
    %28 = vector.shape_cast %27 : vector<16x1xf32> to vector<1x16x1xf32>
    %cst_9 = arith.constant dense<0.000000e+00> : vector<1xf32>
    %29 = vector.multi_reduction <add>, %28, %cst_9 [1, 2] : vector<1x16x1xf32> to vector<1xf32>
    %30 = vector.shape_cast %29 : vector<1xf32> to vector<1x1x1xf32>
    %31 = vector.extract %30[0, 0, 0] : f32 from vector<1x1x1xf32>
    %c0_10 = arith.constant 0 : index
    %c0_11 = arith.constant 0 : index
    %32 = memref.load %arg3[%c0_10, %c0_11] : memref<1x1xf32, #tpu.memory_space<smem>>
    memref.store %31, %arg3[%c0_10, %c0_11] : memref<1x1xf32, #tpu.memory_space<smem>>
    return
  }
  func.func @transform_0(%arg0: i32) -> (i32, i32) {
    %c0_i32 = arith.constant 0 : i32
    %c0_i32_0 = arith.constant 0 : i32
    return %arg0, %c0_i32 : i32, i32
  }
  func.func @transform_1(%arg0: i32) -> (i32, i32) {
    %c0_i32 = arith.constant 0 : i32
    %c0_i32_0 = arith.constant 0 : i32
    return %arg0, %c0_i32 : i32, i32
  }
  func.func @transform_2(%arg0: i32) -> (i32, i32) {
    %c0_i32 = arith.constant 0 : i32
    %c0_i32_0 = arith.constant 0 : i32
    return %arg0, %c0_i32 : i32, i32
  }
}

</mosaic_0001>

<llo_original>
// kernel: tpu_custom_call.1
$region0: #{tpu_custom_call.1}
  #allocation0 [shape = 'u32[]', space=smem, size = 0x4, offset = 0x4, fixed_abs, tag = 'smem constant byte address 0x4 - core index']
  #allocation1 [shape = 'u32[72,128]{1,0:T(1,128)}', space=vmem, size = 0x9000, scoped, tag = 'internal scratch']
  %s0 = inlined_call_operand.vmem [shape: f32[16,32], index: 0, kind: input, shape index: {}]
  %s1 = inlined_call_operand.vmem [shape: s32[16,1], index: 1, kind: input, shape index: {}]
  %s2 = inlined_call_operand.hbm [shape: f32[1,1], index: 2, kind: output, shape index: {}]
  %s3 = sld [smem:[#allocation0]]
  $region18: #{tpu_custom_call.1} parent=0
    _
  %s5 = ssub.s32 1, %s3
  %s6 = scalar_select 0, %s5, %s3
  $region1: #{tpu_custom_call.1} parent=0
    #allocation2 [shape = 'u8[512]{0}', space=smem, size = 0x200, scoped, tag = 'output window, operand 0, single buffered']
    #allocation3 [shape = 's32[1]{0}', space=sflag, size = 0x4, scoped, tag = 'scoped memory for tpu_custom_call.1']
    %7 = vsyncpa [#allocation3], 0
    // Predicated region
    $region2: #{tpu_custom_call.1} parent=1 // pred_check
      _
    $region3: #{tpu_custom_call.1} parent=1 // pred_check_branch
      %9 = sbr.rel (0) target = $region5
    $region4: #{tpu_custom_call.1} parent=1 // pred_region
      _
    $region5: #{tpu_custom_call.1} parent=1 // pred_fallthru
      _
    // Predicated region
    $region6: #{tpu_custom_call.1} parent=1 // pred_check
      _
    $region7: #{tpu_custom_call.1} parent=1 // pred_check_branch
      %11 = sbr.rel (0) target = $region9
    $region8: #{tpu_custom_call.1} parent=1 // pred_region
      _
    $region9: #{tpu_custom_call.1} parent=1 // pred_fallthru
      _
    %v12 = vld [vmem:[%s0] sm:$0xff]
    %v13 = vld [vmem:[%s0 + $0x8] sm:$0xff]
    %v14 = vld [vmem:[%s1] sm:$0xff]
    %v15 = vld [vmem:[%s1 + $0x8] sm:$0xff]
    %vm16 = vcmask 261120
    %v17 = vsel %vm16, %v12, -inf
    %18 = vmax.xlane.f32.xlu0 %v17
    %v19 = vpop.xlane.xlu0 %18
    %v20 = vsel %vm16, %v13, -inf
    %21 = vmax.xlane.f32.xlu0 %v20
    %v22 = vpop.xlane.xlu0 %21
    %v23 = vsub.f32 %v12, %v19
    %v24 = vsub.f32 %v13, %v22
    %v25 = vmul.f32 %v23, 1.442695
    %v26 = vpow.pop %v25
    %v27 = vmul.f32 %v24, 1.442695
    %v28 = vpow.pop %v27
    %v29 = vsel %vm16, %v26, 0.0
    %30 = vadd.xlane.f32.xlu0 %v29
    %v31 = vpop.xlane.xlu0 %30
    %v32 = vsel %vm16, %v28, 0.0
    %33 = vadd.xlane.f32.xlu0 %v32
    %v34 = vpop.xlane.xlu0 %33
    %v35 = vlog2.pop %v31
    %v36 = vmul.f32 %v35, 0.6931472
    %v37 = vlog2.pop %v34
    %v38 = vmul.f32 %v37, 0.6931472
    %v39 = vlaneseq
    %v40 = vand.u32 %v39, 127
    %41 = vset.pattern.permute.xlu0 0
    %42 = vperm.xlu0 %41, %v14
    %v43 = vpop.permute.xlu0 %42
    %44 = vset.pattern.permute.xlu0 0
    %45 = vperm.xlu0 %44, %v15
    %v46 = vpop.permute.xlu0 %45
    %vm47 = vcmp.eq.s32.totalorder %v40, %v43
    %vm48 = vcmp.eq.s32.totalorder %v40, %v46
    %v49 = vsel %vm47, 0.903125, 0.003125
    %v50 = vsel %vm48, 0.903125, 0.003125
    %v51 = vmul.f32 %v49, %v23
    %v52 = vmul.f32 %v50, %v24
    %v53 = vsel %vm16, %v51, 0.0
    %54 = vadd.xlane.f32.xlu0 %v53
    %v55 = vpop.xlane.xlu0 %54
    %v56 = vsel %vm16, %v52, 0.0
    %57 = vadd.xlane.f32.xlu0 %v56
    %v58 = vpop.xlane.xlu0 %57
    %v59 = vsub.f32 %v36, %v55
    %v60 = vsub.f32 %v38, %v58
    %s61 = smul.u32 0, 16
    %v62 = vlaneseq
    %v63 = vshrl.u32 %v62, 7
    %v64 = vadd.s32 %v63, 8
    %v65 = vstv %s61
    %v66 = vadd.s32 %v65, %v63
    %v67 = vadd.s32 %v65, %v64
    %vm68 = vcmp.lt.s32.totalorder %v66, 16
    %vm69 = vcmp.lt.s32.totalorder %v67, 16
    %v70 = vsel %vm68, %v59, 0.0
    %v71 = vsel %vm69, %v60, 0.0
    %vm72 = vcmask 7168
    %v73 = vsel %vm72, %v70, 0.0
    %v74 = vsel %vm72, %v71, 0.0
    %v75 = vadd.f32 %v73, %v74
    %76 = vadd.xlane.f32.xlu0 %v75
    %v77 = vpop.xlane.xlu0 %76
    %v78 = vrot.slane %v77, 4
    %v79 = vadd.f32 %v77, %v78
    %v80 = vrot.slane %v79, 2
    %v81 = vadd.f32 %v79, %v80
    %v82 = vrot.slane %v81, 1
    %v83 = vadd.f32 %v81, %v82
    %s84 = vtos %v83
    %s85 = scalar_lea.smem [#allocation2], 0
    %86 = sst [smem:[%s85]] %s84
    // Predicated region
    $region10: #{tpu_custom_call.1} parent=1 // pred_check
      _
    $region11: #{tpu_custom_call.1} parent=1 // pred_check_branch
      %88 = sbr.rel (0) target = $region13
    $region12: #{tpu_custom_call.1} parent=1 // pred_region
      %90 = vsyncadd [#allocation3], 0
      %s92 = sshll.u32 %s2, 4
      %s93 = int_to_ptr.hbm [resolvable:$true] %s92
      %95 = dma.smem_to_hbm [#allocation2], 16, %s93, [#allocation3]
    $region13: #{tpu_custom_call.1} parent=1 // pred_fallthru
      _
    // Predicated region
    $region14: #{tpu_custom_call.1} parent=1 // pred_check
      _
    $region15: #{tpu_custom_call.1} parent=1 // pred_check_branch
      %97 = sbr.rel (0) target = $region17
    $region16: #{tpu_custom_call.1} parent=1 // pred_region
      %99 = dma.done [#allocation3], 16
    $region17: #{tpu_custom_call.1} parent=1 // pred_fallthru
      _
    %100 = sfence
    %101 = vsyncpa [#allocation3], 1

</llo_original>
